<compile_context>
chip_gen: v7x
topology: tpu7x:2x2x1
jax: 0.10.0
libtpu: 0.0.40
codegen_flags: <defaults>
</compile_context>

<pallas_src>
import functools

import jax
import jax.numpy as jnp
from jax.experimental import pallas as pl
from jax.experimental.pallas import tpu as pltpu

_LANE = 128
_UNROLL_LIMIT = 32  # static-unroll the cg loop up to this many iterations


def _channel_shuffle_kernel(x_ref, o_ref, *, group, tcg):
    # x_ref: (1, group, tcg, thw)    o_ref: (1, tcg * group, thw)
    # out[0, cg*group + g, :] = in[0, g, cg, :]
    if tcg <= _UNROLL_LIMIT:
        # Static unroll: each statement is a strided sublane gather (loads;
        # cheap, 3 vld slots) plus one dense `group`-sublane store.
        for cg in range(tcg):
            o_ref[:, pl.ds(cg * group, group), :] = x_ref[:, :, cg, :]
    else:
        @pl.loop(0, tcg)
        def _(cg):
            val = x_ref[:, :, pl.ds(cg, 1), :]          # (1, group, 1, thw)
            o_ref[:, pl.ds(cg * group, group), :] = val[:, :, 0, :]


def _sublane_multiple(itemsize):
    # Sub-32-bit dtypes pack 2/4 rows per sublane.
    return {4: 8, 2: 16, 1: 32}.get(itemsize, 8)


def _divisor_candidates(n, mult):
    """Divisors of n that are multiples of `mult`, plus n itself (full extent)."""
    cands = {n}
    cands.update(d for d in range(mult, n, mult) if n % d == 0)
    return sorted(cands, reverse=True)


def _pick_tiles(group, cpg, hw, itemsize, *, budget_bytes, batch,
                min_steps=4, min_split_tile=2 << 20):
    sub = _sublane_multiple(itemsize)
    tcg_cands = _divisor_candidates(cpg, sub)
    thw_cands = _divisor_candidates(hw, _LANE)

    def tile_bytes(tc, th):
        return group * tc * th * itemsize

    # Largest tile under budget, preferring full-HW blocks (lane-dense,
    # contiguous writeback) and shrinking the channel axis first.
    tcg, thw = tcg_cands[-1], thw_cands[-1]          # smallest legal fallback
    for th in thw_cands:
        fits = [tc for tc in tcg_cands if tile_bytes(tc, th) <= budget_bytes]
        if fits:
            tcg, thw = fits[0], th
            break

    # Megacore / pipelining: keep a few grid steps, but never shred tiles below
    # ~2 MiB (per-step overhead ~0.35 us would start to dominate).
    def steps(tc, th):
        return batch * (cpg // tc) * (hw // th)

    while steps(tcg, thw) < min_steps:
        next_tcg = next((tc for tc in tcg_cands if tc < tcg), None)
        next_thw = next((th for th in thw_cands if th < thw), None)
        if next_tcg is not None and tile_bytes(next_tcg, thw) >= min_split_tile:
            tcg = next_tcg
        elif next_thw is not None and tile_bytes(tcg, next_thw) >= min_split_tile:
            thw = next_thw
        else:
            break
    return tcg, thw


def channel_shuffle(x_nchw, group):
    b, c, h, w = x_nchw.shape
    assert group > 1 and c % group == 0, "group must be > 1 and divide C"
    cpg = c // group
    hw = h * w
    itemsize = jnp.dtype(x_nchw.dtype).itemsize

    if hw < _LANE:
        # Late (e.g. 7x7) stages: <40% lane utilization and ~200 B HBM runs in
        # a Pallas copy; XLA's transpose is the faster path for these shapes.
        y = x_nchw.reshape(b, group, cpg, h, w)
        y = jnp.transpose(y, (0, 2, 1, 3, 4))
        return y.reshape(b, c, h, w)

    tcg, thw = _pick_tiles(group, cpg, hw, itemsize,
                           budget_bytes=8 << 20, batch=b)

    def _round_up(v, m):
        return (v + m - 1) // m * m

    sub = _sublane_multiple(itemsize)
    in_tile = group * _round_up(tcg, sub) * _round_up(thw, _LANE) * itemsize
    out_tile = _round_up(tcg * group, sub) * _round_up(thw, _LANE) * itemsize
    # Double-buffered in + out tiles + headroom; never declare less than the
    # tiles actually need.  Normal (budgeted) path stays well under v7x 64 MiB.
    vmem_bytes = max(16 << 20, int(2 * (in_tile + out_tile) + (4 << 20)))

    grid = (b, cpg // tcg, hw // thw)

    # Metadata-only views: input is group-major over channels with HW fused on
    # the lane axis; output stays flat over channels (dense sublane extent).
    x_in = x_nchw.reshape(b, group, cpg, hw)

    out = pl.pallas_call(
        functools.partial(_channel_shuffle_kernel, group=group, tcg=tcg),
        out_shape=jax.ShapeDtypeStruct((b, c, hw), x_nchw.dtype),
        grid_spec=pltpu.PrefetchScalarGridSpec(
            num_scalar_prefetch=0,
            grid=grid,
            in_specs=[
                pl.BlockSpec((1, group, tcg, thw), lambda i, j, k: (i, 0, j, k)),
            ],
            out_specs=pl.BlockSpec((1, tcg * group, thw),
                                   lambda i, j, k: (i, j, k)),
        ),
        compiler_params=pltpu.CompilerParams(
            dimension_semantics=("parallel", "parallel", "parallel"),
            vmem_limit_bytes=vmem_bytes,
        ),
        cost_estimate=pl.CostEstimate(
            flops=0,
            transcendentals=0,
            bytes_accessed=2 * b * c * hw * itemsize,
        ),
    )(x_in)
    # Flat output channel cg*group + g is already the shuffled order.
    return out.reshape(b, c, h, w)


def _reference(x, group):
    b, c, h, w = x.shape
    cpg = c // group
    y = x.reshape(b, group, cpg, h, w)
    y = jnp.transpose(y, (0, 2, 1, 3, 4))
    return y.reshape(b, c, h, w)


if __name__ == "__main__":
    key = jax.random.PRNGKey(0)
    B, C, H, W = 2, 32, 16, 16
    GROUP = 4

    x = jax.random.normal(key, (B, C, H, W), dtype=jnp.float32)

    out = jax.block_until_ready(channel_shuffle(x, GROUP))

    ref = _reference(x, GROUP)
    assert out.shape == (B, C, H, W)
    assert bool(jnp.array_equal(out, ref)), "mismatch vs reference"
    print("KERNEL_OK")
</pallas_src>

<mosaic_0001>
module attributes {stable_mosaic.version = 11 : i64} {
  func.func @_channel_shuffle_kernel(%arg0: i32, %arg1: i32, %arg2: i32, %arg3: memref<1x4x8x256xf32, #tpu.memory_space<vmem>>, %arg4: memref<1x32x256xf32, #tpu.memory_space<vmem>>) attributes {dimension_semantics = [#tpu.dimension_semantics<parallel>, #tpu.dimension_semantics<parallel>, #tpu.dimension_semantics<parallel>], iteration_bounds = array<i64: 2, 1, 1>, scalar_prefetch = 0 : i64, scratch_operands = 0 : i64, tpu.core_type = #tpu.core_type<tc>, window_params = [{transform_indices = @transform_0, window_bounds = array<i64: 1, 4, 8, 256>}, {transform_indices = @transform_1, window_bounds = array<i64: 1, 32, 256>}]} {
    %c0 = arith.constant 0 : index
    %c0_0 = arith.constant 0 : index
    %c0_1 = arith.constant 0 : index
    %c0_2 = arith.constant 0 : index
    %0 = vector.load %arg3[%c0, %c0_0, %c0_1, %c0_2] : memref<1x4x8x256xf32, #tpu.memory_space<vmem>>, vector<1x4x1x256xf32>
    %1 = vector.shape_cast %0 : vector<1x4x1x256xf32> to vector<1x4x256xf32>
    %c0_3 = arith.constant 0 : index
    %c0_4 = arith.constant 0 : index
    %c0_5 = arith.constant 0 : index
    %2 = vector.load %arg4[%c0_3, %c0_4, %c0_5] : memref<1x32x256xf32, #tpu.memory_space<vmem>>, vector<1x4x256xf32>
    tpu.vector_store %arg4[%c0_3, %c0_4, %c0_5], %1 {strides = array<i32>} : memref<1x32x256xf32, #tpu.memory_space<vmem>>, vector<1x4x256xf32>,
    %c0_6 = arith.constant 0 : index
    %c0_7 = arith.constant 0 : index
    %c1 = arith.constant 1 : index
    %c0_8 = arith.constant 0 : index
    %3 = vector.load %arg3[%c0_6, %c0_7, %c1, %c0_8] : memref<1x4x8x256xf32, #tpu.memory_space<vmem>>, vector<1x4x1x256xf32>
    %4 = vector.shape_cast %3 : vector<1x4x1x256xf32> to vector<1x4x256xf32>
    %c0_9 = arith.constant 0 : index
    %c4 = arith.constant 4 : index
    %c0_10 = arith.constant 0 : index
    %5 = vector.load %arg4[%c0_9, %c4, %c0_10] : memref<1x32x256xf32, #tpu.memory_space<vmem>>, vector<1x4x256xf32>
    tpu.vector_store %arg4[%c0_9, %c4, %c0_10], %4 {strides = array<i32>} : memref<1x32x256xf32, #tpu.memory_space<vmem>>, vector<1x4x256xf32>,
    %c0_11 = arith.constant 0 : index
    %c0_12 = arith.constant 0 : index
    %c2 = arith.constant 2 : index
    %c0_13 = arith.constant 0 : index
    %6 = vector.load %arg3[%c0_11, %c0_12, %c2, %c0_13] : memref<1x4x8x256xf32, #tpu.memory_space<vmem>>, vector<1x4x1x256xf32>
    %7 = vector.shape_cast %6 : vector<1x4x1x256xf32> to vector<1x4x256xf32>
    %c0_14 = arith.constant 0 : index
    %c8 = arith.constant 8 : index
    %c0_15 = arith.constant 0 : index
    %8 = vector.load %arg4[%c0_14, %c8, %c0_15] : memref<1x32x256xf32, #tpu.memory_space<vmem>>, vector<1x4x256xf32>
    tpu.vector_store %arg4[%c0_14, %c8, %c0_15], %7 {strides = array<i32>} : memref<1x32x256xf32, #tpu.memory_space<vmem>>, vector<1x4x256xf32>,
    %c0_16 = arith.constant 0 : index
    %c0_17 = arith.constant 0 : index
    %c3 = arith.constant 3 : index
    %c0_18 = arith.constant 0 : index
    %9 = vector.load %arg3[%c0_16, %c0_17, %c3, %c0_18] : memref<1x4x8x256xf32, #tpu.memory_space<vmem>>, vector<1x4x1x256xf32>
    %10 = vector.shape_cast %9 : vector<1x4x1x256xf32> to vector<1x4x256xf32>
    %c0_19 = arith.constant 0 : index
    %c12 = arith.constant 12 : index
    %c0_20 = arith.constant 0 : index
    %11 = vector.load %arg4[%c0_19, %c12, %c0_20] : memref<1x32x256xf32, #tpu.memory_space<vmem>>, vector<1x4x256xf32>
    tpu.vector_store %arg4[%c0_19, %c12, %c0_20], %10 {strides = array<i32>} : memref<1x32x256xf32, #tpu.memory_space<vmem>>, vector<1x4x256xf32>,
    %c0_21 = arith.constant 0 : index
    %c0_22 = arith.constant 0 : index
    %c4_23 = arith.constant 4 : index
    %c0_24 = arith.constant 0 : index
    %12 = vector.load %arg3[%c0_21, %c0_22, %c4_23, %c0_24] : memref<1x4x8x256xf32, #tpu.memory_space<vmem>>, vector<1x4x1x256xf32>
    %13 = vector.shape_cast %12 : vector<1x4x1x256xf32> to vector<1x4x256xf32>
    %c0_25 = arith.constant 0 : index
    %c16 = arith.constant 16 : index
    %c0_26 = arith.constant 0 : index
    %14 = vector.load %arg4[%c0_25, %c16, %c0_26] : memref<1x32x256xf32, #tpu.memory_space<vmem>>, vector<1x4x256xf32>
    tpu.vector_store %arg4[%c0_25, %c16, %c0_26], %13 {strides = array<i32>} : memref<1x32x256xf32, #tpu.memory_space<vmem>>, vector<1x4x256xf32>,
    %c0_27 = arith.constant 0 : index
    %c0_28 = arith.constant 0 : index
    %c5 = arith.constant 5 : index
    %c0_29 = arith.constant 0 : index
    %15 = vector.load %arg3[%c0_27, %c0_28, %c5, %c0_29] : memref<1x4x8x256xf32, #tpu.memory_space<vmem>>, vector<1x4x1x256xf32>
    %16 = vector.shape_cast %15 : vector<1x4x1x256xf32> to vector<1x4x256xf32>
    %c0_30 = arith.constant 0 : index
    %c20 = arith.constant 20 : index
    %c0_31 = arith.constant 0 : index
    %17 = vector.load %arg4[%c0_30, %c20, %c0_31] : memref<1x32x256xf32, #tpu.memory_space<vmem>>, vector<1x4x256xf32>
    tpu.vector_store %arg4[%c0_30, %c20, %c0_31], %16 {strides = array<i32>} : memref<1x32x256xf32, #tpu.memory_space<vmem>>, vector<1x4x256xf32>,
    %c0_32 = arith.constant 0 : index
    %c0_33 = arith.constant 0 : index
    %c6 = arith.constant 6 : index
    %c0_34 = arith.constant 0 : index
    %18 = vector.load %arg3[%c0_32, %c0_33, %c6, %c0_34] : memref<1x4x8x256xf32, #tpu.memory_space<vmem>>, vector<1x4x1x256xf32>
    %19 = vector.shape_cast %18 : vector<1x4x1x256xf32> to vector<1x4x256xf32>
    %c0_35 = arith.constant 0 : index
    %c24 = arith.constant 24 : index
    %c0_36 = arith.constant 0 : index
    %20 = vector.load %arg4[%c0_35, %c24, %c0_36] : memref<1x32x256xf32, #tpu.memory_space<vmem>>, vector<1x4x256xf32>
    tpu.vector_store %arg4[%c0_35, %c24, %c0_36], %19 {strides = array<i32>} : memref<1x32x256xf32, #tpu.memory_space<vmem>>, vector<1x4x256xf32>,
    %c0_37 = arith.constant 0 : index
    %c0_38 = arith.constant 0 : index
    %c7 = arith.constant 7 : index
    %c0_39 = arith.constant 0 : index
    %21 = vector.load %arg3[%c0_37, %c0_38, %c7, %c0_39] : memref<1x4x8x256xf32, #tpu.memory_space<vmem>>, vector<1x4x1x256xf32>
    %22 = vector.shape_cast %21 : vector<1x4x1x256xf32> to vector<1x4x256xf32>
    %c0_40 = arith.constant 0 : index
    %c28 = arith.constant 28 : index
    %c0_41 = arith.constant 0 : index
    %23 = vector.load %arg4[%c0_40, %c28, %c0_41] : memref<1x32x256xf32, #tpu.memory_space<vmem>>, vector<1x4x256xf32>
    tpu.vector_store %arg4[%c0_40, %c28, %c0_41], %22 {strides = array<i32>} : memref<1x32x256xf32, #tpu.memory_space<vmem>>, vector<1x4x256xf32>,
    return
  }
  func.func @transform_0(%arg0: i32, %arg1: i32, %arg2: i32) -> (i32, i32, i32, i32) {
    %c0_i32 = arith.constant 0 : i32
    %c0_i32_0 = arith.constant 0 : i32
    return %arg0, %c0_i32, %arg1, %arg2 : i32, i32, i32, i32
  }
  func.func @transform_1(%arg0: i32, %arg1: i32, %arg2: i32) -> (i32, i32, i32) {
    %c0_i32 = arith.constant 0 : i32
    return %arg0, %arg1, %arg2 : i32, i32, i32
  }
}

</mosaic_0001>

<llo_original>
// kernel: tpu_custom_call.1
$region0: #{tpu_custom_call.1}
  #allocation0 [shape = 'u32[]', space=smem, size = 0x4, offset = 0x4, fixed_abs, tag = 'smem constant byte address 0x4 - core index']
  #allocation1 [shape = 'u32[144,128]{1,0:T(1,128)}', space=vmem, size = 0x12000, scoped, tag = 'internal scratch']
  %s0 = inlined_call_operand.hbm [shape: f32[2,4,8,256], index: 0, kind: input, shape index: {}]
  %s1 = inlined_call_operand.hbm [shape: f32[2,32,256], index: 1, kind: output, shape index: {}]
  %s2 = sld [smem:[#allocation0]]
  $region41: #{tpu_custom_call.1} parent=0
    _
  %s4 = ssub.s32 1, %s2
  %s5 = scalar_select 0, %s4, %s2
  $region1: #{tpu_custom_call.1} parent=0
    #allocation2 [shape = 'u8[65536]{0}', space=vmem, size = 0x10000, scoped, tag = 'input window, operand 0']
    #allocation3 [shape = 's32[2]{0}', space=sflag, size = 0x8, scoped, tag = 'scoped memory for tpu_custom_call.1']
    #allocation4 [shape = 's32[2]{0}', space=sflag, size = 0x8, scoped, tag = 'scoped memory for tpu_custom_call.1']
    #allocation5 [shape = 'u8[65536]{0}', space=vmem, size = 0x10000, scoped, tag = 'output window, operand 0']
    %6 = vsyncpa [#allocation3], 0
    %s7 = scalar_lea.sflag [#allocation3], 1
    %8 = vsyncpa %s7, 0
    %9 = vsyncpa [#allocation4], 0
    %s10 = scalar_lea.sflag [#allocation4], 1
    %11 = vsyncpa %s10, 0
    loop: start=0, step=1, limit=4
    $region2: #{tpu_custom_call.1} parent=1 // loop_pre_header
      _
    $region3: #{tpu_custom_call.1} parent=1 // loop_header
      %s13 = sphi 0, %s17
      %p14 = scmp.ge.s32.totalorder %s13, 4
      %s20 = sphi 0, %s39
      %s21 = sphi 0, %s35
      %s22 = sphi 0, %s31
      %s23 = sphi 0, %s20
      %s24 = sphi 0, %s21
      %s25 = sphi 0, %s22
      %s26 = sphi 0, %s23
      %s27 = sphi 0, %s24
      %s28 = sphi 0, %s25
      %s46 = sphi 0, %s48
      %s49 = sphi 0, %s46
      %s50 = sphi 0, %s49
      %s66 = sphi 0, %s50
      %s76 = sphi 0, %s78
      %s79 = sphi 0, %s76
      %s80 = sphi 0, %s79
      %s96 = sphi 0, %s80
    $region4: #{tpu_custom_call.1} parent=1 // loop_header_branch
      %16 = sbr.rel (%p14) target = $region8
    $region5: #{tpu_custom_call.1} parent=1 // loop_body
      %s18 = ssub.s32 %s13, 1
      %s19 = ssub.s32 %s13, 2
      %s29 = sadd.s32 1, %s22
      %p30 = scmp.ge.s32.totalorder %s29, 1
      %s31 = scalar_select %p30, 0, %s29
      %s32 = sadd.s32 1, %s21
      %s33 = scalar_select %p30, %s32, %s21
      %p34 = scmp.ge.s32.totalorder %s33, 1
      %s35 = scalar_select %p34, 0, %s33
      %s36 = sadd.s32 1, %s20
      %s37 = scalar_select %p34, %s36, %s20
      %p38 = scmp.ge.s32.totalorder %s37, 2
      %s39 = scalar_select %p38, 0, %s37
      %s40 = ssub.s32 %s20, %s39
      %s41 = ssub.s32 %s21, %s35
      %s42 = sor.u32 %s40, %s41
      %s43 = ssub.s32 %s22, %s31
      %s44 = sor.u32 %s42, %s43
      %p45 = scmp.eq.s32.totalorder %s44, 0
      %s47 = sadd.s32 %s46, 1
      %s48 = scalar_select %p45, %s46, %s47
      %p51 = pneg %p45
      %p52 = scmp.eq.s32.totalorder %s13, 1
      %p53 = por %p51, %p52
      %p54 = scmp.ne.s32.totalorder %s46, %s49
      %p55 = scmp.eq.s32.totalorder %s13, 0
      %p56 = por %p54, %p55
      %p57 = scmp.ne.s32.totalorder %s46, %s49
      %p58 = scmp.eq.s32.totalorder %s18, 1
      %p59 = por %p57, %p58
      %p60 = scmp.ne.s32.totalorder %s49, %s50
      %p61 = scmp.eq.s32.totalorder %s18, 0
      %p62 = por %p60, %p61
      %p63 = scmp.ne.s32.totalorder %s49, %s50
      %p64 = scmp.eq.s32.totalorder %s19, 1
      %p65 = por %p63, %p64
      %p67 = scmp.ne.s32.totalorder %s50, %s66
      %p68 = scmp.eq.s32.totalorder %s19, 0
      %p69 = por %p67, %p68
      %s70 = ssub.s32 %s20, %s39
      %s71 = ssub.s32 %s21, %s35
      %s72 = sor.u32 %s70, %s71
      %s73 = ssub.s32 %s22, %s31
      %s74 = sor.u32 %s72, %s73
      %p75 = scmp.eq.s32.totalorder %s74, 0
      %s77 = sadd.s32 %s76, 1
      %s78 = scalar_select %p75, %s76, %s77
      %p81 = pneg %p75
      %p82 = scmp.eq.s32.totalorder %s13, 1
      %p83 = por %p81, %p82
      %p84 = scmp.ne.s32.totalorder %s76, %s79
      %p85 = scmp.eq.s32.totalorder %s13, 0
      %p86 = por %p84, %p85
      %p87 = scmp.ne.s32.totalorder %s76, %s79
      %p88 = scmp.eq.s32.totalorder %s18, 1
      %p89 = por %p87, %p88
      %p90 = scmp.ne.s32.totalorder %s79, %s80
      %p91 = scmp.eq.s32.totalorder %s18, 0
      %p92 = por %p90, %p91
      %p93 = scmp.ne.s32.totalorder %s79, %s80
      %p94 = scmp.eq.s32.totalorder %s19, 1
      %p95 = por %p93, %p94
      %p97 = scmp.ne.s32.totalorder %s80, %s96
      %p98 = scmp.eq.s32.totalorder %s19, 0
      %p99 = por %p97, %p98
      %p100 = scmp.le.s32.totalorder 1, %s13
      %p101 = scmp.lt.s32.totalorder %s13, 3
      %p102 = pnand %p100, %p101
      %p103 = pneg %p102
      // Predicated region
      $region9: #{tpu_custom_call.1} parent=5 // pred_check
        _
      $region10: #{tpu_custom_call.1} parent=5 // pred_check_branch
        %105 = sbr.rel (%p102) target = $region12
      $region11: #{tpu_custom_call.1} parent=5 // pred_region
        %s106 = ssub.s32 %s13, 1
      $region12: #{tpu_custom_call.1} parent=5 // pred_fallthru
        _
      %p107 = scmp.lt.s32.totalorder %s13, 2
      // Predicated region
      $region13: #{tpu_custom_call.1} parent=5 // pred_check
        %p108 = pneg %p107
      $region14: #{tpu_custom_call.1} parent=5 // pred_check_branch
        %110 = sbr.rel (%p108) target = $region16
      $region15: #{tpu_custom_call.1} parent=5 // pred_region
        // Predicated region
        $region17: #{tpu_custom_call.1} parent=15 // pred_check
          %p111 = pneg %p56
        $region18: #{tpu_custom_call.1} parent=15 // pred_check_branch
          %113 = sbr.rel (%p111) target = $region20
        $region19: #{tpu_custom_call.1} parent=15 // pred_region
          %s114 = sand.u32 %s46, 1
          %s115 = scalar_lea.sflag [#allocation3], %s114
          %s116 = sand.u32 %s46, 1
          %s117 = smul.addr %s116, 64
          %s118 = scalar_lea.vmem [#allocation2], %s117
          %s119 = smul.u32 2, %s22
          %s121 = ssub.s32 1024, 1024
          %122 = vsyncadd %s115, %s121
          %s123 = smul.addr %s21, 2
          %s124 = sadd.s32 %s119, %s123
          %s125 = smul.addr %s20, 8
          %s126 = sadd.s32 %s124, %s125
          %s127 = smul.addr %s126, 128
          %s128 = scalar_lea.hbm %s0, %s127
          %s129 = sshll.u32 %s118, 4
          %s130 = int_to_ptr.vmem [resolvable:$true] %s129
          %135 = dma.hbm_to_vmem [thread:$0]  %s128, 1024, %s130, %s115, 256, 256, 16
        $region20: #{tpu_custom_call.1} parent=15 // pred_fallthru
          _
      $region16: #{tpu_custom_call.1} parent=5 // pred_fallthru
        _
      %p136 = scmp.le.s32.totalorder 1, %s13
      %p137 = scmp.lt.s32.totalorder %s13, 3
      %p138 = pnand %p136, %p137
      %p139 = pneg %p138
      // Predicated region
      $region21: #{tpu_custom_call.1} parent=5 // pred_check
        _
      $region22: #{tpu_custom_call.1} parent=5 // pred_check_branch
        %141 = sbr.rel (%p138) target = $region24
      $region23: #{tpu_custom_call.1} parent=5 // pred_region
        %s142 = ssub.s32 %s13, 1
        %s143 = sand.u32 %s49, 1
        %s144 = scalar_lea.sflag [#allocation3], %s143
        %s145 = sand.u32 %s49, 1
        %s146 = smul.addr %s145, 64
        %s147 = scalar_lea.vmem [#allocation2], %s146
        // Predicated region
        $region25: #{tpu_custom_call.1} parent=23 // pred_check
          %p148 = pneg %p62
        $region26: #{tpu_custom_call.1} parent=23 // pred_check_branch
          %150 = sbr.rel (%p148) target = $region28
        $region27: #{tpu_custom_call.1} parent=23 // pred_region
          %151 = dma.done %s144, 1024
        $region28: #{tpu_custom_call.1} parent=23 // pred_fallthru
          _
        %s152 = sand.u32 %s49, 1
        %s153 = scalar_lea.sflag [#allocation3], %s152
        %s154 = sand.u32 %s49, 1
        %s155 = smul.addr %s154, 64
        %s156 = scalar_lea.vmem [#allocation2], %s155
        %p157 = pneg %p62
        %p158 = pneg %p59
        %p159 = pneg %p92
        %p160 = pneg %p89
        %s161 = sand.u32 %s79, 1
        %s162 = scalar_lea.sflag [#allocation4], %s161
        %s163 = sand.u32 %s79, 1
        %s164 = smul.addr %s163, 64
        %s165 = scalar_lea.vmem [#allocation5], %s164
        %s166 = smul.u32 2, %s25
        %s167 = smul.u32 4, %s24
        %s168 = smul.u32 2, %s25
        %v169 = vld [vmem:[%s147] ss:$8 sm:$0x3]
        %s170 = scalar_lea.vmem %s147, 16 [#allocation2]
        %v171 = vld [vmem:[%s170] ss:$8 sm:$0x3]
        %s172 = scalar_lea.vmem %s147, 32 [#allocation2]
        %v173 = vld [vmem:[%s172] ss:$8 sm:$0x3]
        %s174 = scalar_lea.vmem %s147, 48 [#allocation2]
        %v175 = vld [vmem:[%s174] ss:$8 sm:$0x3]
        %v180 = vcombine.low %v169, %v171
        %v181 = vcombine.low %v173, %v175
        %v183 = vunpack.c.l.s4 1966171168
        %v184 = vunpack.c.0.s8 %v183
        %v185 = vlaneseq
        %v186 = vshrl.u32 %v185, 7
        %v187 = vsub.s32 %v184, %v186
        %v188 = vrot.slane %v180, %v187
        %v190 = vunpack.c.l.s4 1966171168
        %v191 = vunpack.c.0.s8 %v190
        %v192 = vlaneseq
        %v193 = vshrl.u32 %v192, 7
        %v194 = vsub.s32 %v191, %v193
        %v195 = vrot.slane %v181, %v194
        %v196 = vcombine.low %v188, %v195
        %v197 = vcombine.high %v188, %v195
        %v199 = vunpack.c.l.s4 1966171168
        %v200 = vunpack.c.0.s8 %v199
        %v201 = vlaneseq
        %v202 = vshrl.u32 %v201, 7
        %v203 = vsub.s32 %v200, %v202
        %v204 = vrot.slane %v196, %v203
        %v206 = vunpack.c.l.s4 1966171168
        %v207 = vunpack.c.0.s8 %v206
        %v208 = vlaneseq
        %v209 = vshrl.u32 %v208, 7
        %v210 = vsub.s32 %v207, %v209
        %v211 = vrot.slane %v197, %v210
        %214 = vst [vmem:[%s165] sm:$0xf] %v204
        %215 = vst [vmem:[%s165 + $0x8] sm:$0xf] %v211
        %s216 = scalar_lea.vmem %s147, 1 [#allocation2]
        %v217 = vld [vmem:[%s216] ss:$8 sm:$0x3]
        %s218 = scalar_lea.vmem %s147, 17 [#allocation2]
        %v219 = vld [vmem:[%s218] ss:$8 sm:$0x3]
        %s220 = scalar_lea.vmem %s147, 33 [#allocation2]
        %v221 = vld [vmem:[%s220] ss:$8 sm:$0x3]
        %s222 = scalar_lea.vmem %s147, 49 [#allocation2]
        %v223 = vld [vmem:[%s222] ss:$8 sm:$0x3]
        %v228 = vcombine.low %v217, %v219
        %v229 = vcombine.low %v221, %v223
        %v231 = vunpack.c.l.s4 1966171168
        %v232 = vunpack.c.0.s8 %v231
        %v233 = vlaneseq
        %v234 = vshrl.u32 %v233, 7
        %v235 = vsub.s32 %v232, %v234
        %v236 = vrot.slane %v228, %v235
        %v238 = vunpack.c.l.s4 1966171168
        %v239 = vunpack.c.0.s8 %v238
        %v240 = vlaneseq
        %v241 = vshrl.u32 %v240, 7
        %v242 = vsub.s32 %v239, %v241
        %v243 = vrot.slane %v229, %v242
        %v244 = vcombine.low %v236, %v243
        %v245 = vcombine.high %v236, %v243
        %v247 = vunpack.c.l.s4 1966171168
        %v248 = vunpack.c.0.s8 %v247
        %v249 = vlaneseq
        %v250 = vshrl.u32 %v249, 7
        %v251 = vsub.s32 %v248, %v250
        %v252 = vrot.slane %v244, %v251
        %v254 = vunpack.c.l.s4 1966171168
        %v255 = vunpack.c.0.s8 %v254
        %v256 = vlaneseq
        %v257 = vshrl.u32 %v256, 7
        %v258 = vsub.s32 %v255, %v257
        %v259 = vrot.slane %v245, %v258
        %v260 = vcombine.low %v252, %v252
        %v261 = vcombine.low %v259, %v259
        %264 = vst [vmem:[%s165] sm:$0xf0] %v260
        %265 = vst [vmem:[%s165 + $0x8] sm:$0xf0] %v261
        %s266 = scalar_lea.vmem %s147, 2 [#allocation2]
        %v267 = vld [vmem:[%s266] ss:$8 sm:$0x3]
        %s268 = scalar_lea.vmem %s147, 18 [#allocation2]
        %v269 = vld [vmem:[%s268] ss:$8 sm:$0x3]
        %s270 = scalar_lea.vmem %s147, 34 [#allocation2]
        %v271 = vld [vmem:[%s270] ss:$8 sm:$0x3]
        %s272 = scalar_lea.vmem %s147, 50 [#allocation2]
        %v273 = vld [vmem:[%s272] ss:$8 sm:$0x3]
        %v278 = vcombine.low %v267, %v269
        %v279 = vcombine.low %v271, %v273
        %v281 = vunpack.c.l.s4 1966171168
        %v282 = vunpack.c.0.s8 %v281
        %v283 = vlaneseq
        %v284 = vshrl.u32 %v283, 7
        %v285 = vsub.s32 %v282, %v284
        %v286 = vrot.slane %v278, %v285
        %v288 = vunpack.c.l.s4 1966171168
        %v289 = vunpack.c.0.s8 %v288
        %v290 = vlaneseq
        %v291 = vshrl.u32 %v290, 7
        %v292 = vsub.s32 %v289, %v291
        %v293 = vrot.slane %v279, %v292
        %v294 = vcombine.low %v286, %v293
        %v295 = vcombine.high %v286, %v293
        %v297 = vunpack.c.l.s4 1966171168
        %v298 = vunpack.c.0.s8 %v297
        %v299 = vlaneseq
        %v300 = vshrl.u32 %v299, 7
        %v301 = vsub.s32 %v298, %v300
        %v302 = vrot.slane %v294, %v301
        %v304 = vunpack.c.l.s4 1966171168
        %v305 = vunpack.c.0.s8 %v304
        %v306 = vlaneseq
        %v307 = vshrl.u32 %v306, 7
        %v308 = vsub.s32 %v305, %v307
        %v309 = vrot.slane %v295, %v308
        %312 = vst [vmem:[%s165 + $0x10] sm:$0xf] %v302
        %313 = vst [vmem:[%s165 + $0x18] sm:$0xf] %v309
        %s314 = scalar_lea.vmem %s147, 3 [#allocation2]
        %v315 = vld [vmem:[%s314] ss:$8 sm:$0x3]
        %s316 = scalar_lea.vmem %s147, 19 [#allocation2]
        %v317 = vld [vmem:[%s316] ss:$8 sm:$0x3]
        %s318 = scalar_lea.vmem %s147, 35 [#allocation2]
        %v319 = vld [vmem:[%s318] ss:$8 sm:$0x3]
        %s320 = scalar_lea.vmem %s147, 51 [#allocation2]
        %v321 = vld [vmem:[%s320] ss:$8 sm:$0x3]
        %v326 = vcombine.low %v315, %v317
        %v327 = vcombine.low %v319, %v321
        %v329 = vunpack.c.l.s4 1966171168
        %v330 = vunpack.c.0.s8 %v329
        %v331 = vlaneseq
        %v332 = vshrl.u32 %v331, 7
        %v333 = vsub.s32 %v330, %v332
        %v334 = vrot.slane %v326, %v333
        %v336 = vunpack.c.l.s4 1966171168
        %v337 = vunpack.c.0.s8 %v336
        %v338 = vlaneseq
        %v339 = vshrl.u32 %v338, 7
        %v340 = vsub.s32 %v337, %v339
        %v341 = vrot.slane %v327, %v340
        %v342 = vcombine.low %v334, %v341
        %v343 = vcombine.high %v334, %v341
        %v345 = vunpack.c.l.s4 1966171168
        %v346 = vunpack.c.0.s8 %v345
        %v347 = vlaneseq
        %v348 = vshrl.u32 %v347, 7
        %v349 = vsub.s32 %v346, %v348
        %v350 = vrot.slane %v342, %v349
        %v352 = vunpack.c.l.s4 1966171168
        %v353 = vunpack.c.0.s8 %v352
        %v354 = vlaneseq
        %v355 = vshrl.u32 %v354, 7
        %v356 = vsub.s32 %v353, %v355
        %v357 = vrot.slane %v343, %v356
        %v358 = vcombine.low %v350, %v350
        %v359 = vcombine.low %v357, %v357
        %362 = vst [vmem:[%s165 + $0x10] sm:$0xf0] %v358
        %363 = vst [vmem:[%s165 + $0x18] sm:$0xf0] %v359
        %s364 = scalar_lea.vmem %s147, 4 [#allocation2]
        %v365 = vld [vmem:[%s364] ss:$8 sm:$0x3]
        %s366 = scalar_lea.vmem %s147, 20 [#allocation2]
        %v367 = vld [vmem:[%s366] ss:$8 sm:$0x3]
        %s368 = scalar_lea.vmem %s147, 36 [#allocation2]
        %v369 = vld [vmem:[%s368] ss:$8 sm:$0x3]
        %s370 = scalar_lea.vmem %s147, 52 [#allocation2]
        %v371 = vld [vmem:[%s370] ss:$8 sm:$0x3]
        %v376 = vcombine.low %v365, %v367
        %v377 = vcombine.low %v369, %v371
        %v379 = vunpack.c.l.s4 1966171168
        %v380 = vunpack.c.0.s8 %v379
        %v381 = vlaneseq
        %v382 = vshrl.u32 %v381, 7
        %v383 = vsub.s32 %v380, %v382
        %v384 = vrot.slane %v376, %v383
        %v386 = vunpack.c.l.s4 1966171168
        %v387 = vunpack.c.0.s8 %v386
        %v388 = vlaneseq
        %v389 = vshrl.u32 %v388, 7
        %v390 = vsub.s32 %v387, %v389
        %v391 = vrot.slane %v377, %v390
        %v392 = vcombine.low %v384, %v391
        %v393 = vcombine.high %v384, %v391
        %v395 = vunpack.c.l.s4 1966171168
        %v396 = vunpack.c.0.s8 %v395
        %v397 = vlaneseq
        %v398 = vshrl.u32 %v397, 7
        %v399 = vsub.s32 %v396, %v398
        %v400 = vrot.slane %v392, %v399
        %v402 = vunpack.c.l.s4 1966171168
        %v403 = vunpack.c.0.s8 %v402
        %v404 = vlaneseq
        %v405 = vshrl.u32 %v404, 7
        %v406 = vsub.s32 %v403, %v405
        %v407 = vrot.slane %v393, %v406
        %410 = vst [vmem:[%s165 + $0x20] sm:$0xf] %v400
        %411 = vst [vmem:[%s165 + $0x28] sm:$0xf] %v407
        %s412 = scalar_lea.vmem %s147, 5 [#allocation2]
        %v413 = vld [vmem:[%s412] ss:$8 sm:$0x3]
        %s414 = scalar_lea.vmem %s147, 21 [#allocation2]
        %v415 = vld [vmem:[%s414] ss:$8 sm:$0x3]
        %s416 = scalar_lea.vmem %s147, 37 [#allocation2]
        %v417 = vld [vmem:[%s416] ss:$8 sm:$0x3]
        %s418 = scalar_lea.vmem %s147, 53 [#allocation2]
        %v419 = vld [vmem:[%s418] ss:$8 sm:$0x3]
        %v424 = vcombine.low %v413, %v415
        %v425 = vcombine.low %v417, %v419
        %v427 = vunpack.c.l.s4 1966171168
        %v428 = vunpack.c.0.s8 %v427
        %v429 = vlaneseq
        %v430 = vshrl.u32 %v429, 7
        %v431 = vsub.s32 %v428, %v430
        %v432 = vrot.slane %v424, %v431
        %v434 = vunpack.c.l.s4 1966171168
        %v435 = vunpack.c.0.s8 %v434
        %v436 = vlaneseq
        %v437 = vshrl.u32 %v436, 7
        %v438 = vsub.s32 %v435, %v437
        %v439 = vrot.slane %v425, %v438
        %v440 = vcombine.low %v432, %v439
        %v441 = vcombine.high %v432, %v439
        %v443 = vunpack.c.l.s4 1966171168
        %v444 = vunpack.c.0.s8 %v443
        %v445 = vlaneseq
        %v446 = vshrl.u32 %v445, 7
        %v447 = vsub.s32 %v444, %v446
        %v448 = vrot.slane %v440, %v447
        %v450 = vunpack.c.l.s4 1966171168
        %v451 = vunpack.c.0.s8 %v450
        %v452 = vlaneseq
        %v453 = vshrl.u32 %v452, 7
        %v454 = vsub.s32 %v451, %v453
        %v455 = vrot.slane %v441, %v454
        %v456 = vcombine.low %v448, %v448
        %v457 = vcombine.low %v455, %v455
        %460 = vst [vmem:[%s165 + $0x20] sm:$0xf0] %v456
        %461 = vst [vmem:[%s165 + $0x28] sm:$0xf0] %v457
        %s462 = scalar_lea.vmem %s147, 6 [#allocation2]
        %v463 = vld [vmem:[%s462] ss:$8 sm:$0x3]
        %s464 = scalar_lea.vmem %s147, 22 [#allocation2]
        %v465 = vld [vmem:[%s464] ss:$8 sm:$0x3]
        %s466 = scalar_lea.vmem %s147, 38 [#allocation2]
        %v467 = vld [vmem:[%s466] ss:$8 sm:$0x3]
        %s468 = scalar_lea.vmem %s147, 54 [#allocation2]
        %v469 = vld [vmem:[%s468] ss:$8 sm:$0x3]
        %v474 = vcombine.low %v463, %v465
        %v475 = vcombine.low %v467, %v469
        %v477 = vunpack.c.l.s4 1966171168
        %v478 = vunpack.c.0.s8 %v477
        %v479 = vlaneseq
        %v480 = vshrl.u32 %v479, 7
        %v481 = vsub.s32 %v478, %v480
        %v482 = vrot.slane %v474, %v481
        %v484 = vunpack.c.l.s4 1966171168
        %v485 = vunpack.c.0.s8 %v484
        %v486 = vlaneseq
        %v487 = vshrl.u32 %v486, 7
        %v488 = vsub.s32 %v485, %v487
        %v489 = vrot.slane %v475, %v488
        %v490 = vcombine.low %v482, %v489
        %v491 = vcombine.high %v482, %v489
        %v493 = vunpack.c.l.s4 1966171168
        %v494 = vunpack.c.0.s8 %v493
        %v495 = vlaneseq
        %v496 = vshrl.u32 %v495, 7
        %v497 = vsub.s32 %v494, %v496
        %v498 = vrot.slane %v490, %v497
        %v500 = vunpack.c.l.s4 1966171168
        %v501 = vunpack.c.0.s8 %v500
        %v502 = vlaneseq
        %v503 = vshrl.u32 %v502, 7
        %v504 = vsub.s32 %v501, %v503
        %v505 = vrot.slane %v491, %v504
        %508 = vst [vmem:[%s165 + $0x30] sm:$0xf] %v498
        %509 = vst [vmem:[%s165 + $0x38] sm:$0xf] %v505
        %s510 = scalar_lea.vmem %s147, 7 [#allocation2]
        %v511 = vld [vmem:[%s510] ss:$8 sm:$0x3]
        %s512 = scalar_lea.vmem %s147, 23 [#allocation2]
        %v513 = vld [vmem:[%s512] ss:$8 sm:$0x3]
        %s514 = scalar_lea.vmem %s147, 39 [#allocation2]
        %v515 = vld [vmem:[%s514] ss:$8 sm:$0x3]
        %s516 = scalar_lea.vmem %s147, 55 [#allocation2]
        %v517 = vld [vmem:[%s516] ss:$8 sm:$0x3]
        %v522 = vcombine.low %v511, %v513
        %v523 = vcombine.low %v515, %v517
        %v525 = vunpack.c.l.s4 1966171168
        %v526 = vunpack.c.0.s8 %v525
        %v527 = vlaneseq
        %v528 = vshrl.u32 %v527, 7
        %v529 = vsub.s32 %v526, %v528
        %v530 = vrot.slane %v522, %v529
        %v532 = vunpack.c.l.s4 1966171168
        %v533 = vunpack.c.0.s8 %v532
        %v534 = vlaneseq
        %v535 = vshrl.u32 %v534, 7
        %v536 = vsub.s32 %v533, %v535
        %v537 = vrot.slane %v523, %v536
        %v538 = vcombine.low %v530, %v537
        %v539 = vcombine.high %v530, %v537
        %v541 = vunpack.c.l.s4 1966171168
        %v542 = vunpack.c.0.s8 %v541
        %v543 = vlaneseq
        %v544 = vshrl.u32 %v543, 7
        %v545 = vsub.s32 %v542, %v544
        %v546 = vrot.slane %v538, %v545
        %v548 = vunpack.c.l.s4 1966171168
        %v549 = vunpack.c.0.s8 %v548
        %v550 = vlaneseq
        %v551 = vshrl.u32 %v550, 7
        %v552 = vsub.s32 %v549, %v551
        %v553 = vrot.slane %v539, %v552
        %v554 = vcombine.low %v546, %v546
        %v555 = vcombine.low %v553, %v553
        %558 = vst [vmem:[%s165 + $0x30] sm:$0xf0] %v554
        %559 = vst [vmem:[%s165 + $0x38] sm:$0xf0] %v555
        %s560 = sand.u32 %s79, 1
        %s561 = scalar_lea.sflag [#allocation4], %s560
        %s562 = sand.u32 %s79, 1
        %s563 = smul.addr %s562, 64
        %s564 = scalar_lea.vmem [#allocation5], %s563
        // Predicated region
        $region29: #{tpu_custom_call.1} parent=23 // pred_check
          %p565 = pneg %p89
        $region30: #{tpu_custom_call.1} parent=23 // pred_check_branch
          %567 = sbr.rel (%p565) target = $region32
        $region31: #{tpu_custom_call.1} parent=23 // pred_region
          %s568 = smul.u32 4, %s24
          %s569 = smul.u32 2, %s25
          %s571 = ssub.s32 1024, 1024
          %572 = vsyncadd %s561, %s571
          %s573 = smul.addr %s568, 2
          %s574 = sadd.s32 %s569, %s573
          %s575 = smul.addr %s23, 8
          %s576 = sadd.s32 %s574, %s575
          %s577 = smul.addr %s576, 128
          %s578 = scalar_lea.hbm %s1, %s577
          %s579 = sshll.u32 %s564, 4
          %s580 = int_to_ptr.vmem [resolvable:$true] %s579
          %585 = dma.vmem_to_hbm [thread:$0]  %s580, 1024, %s578, %s561, 256, 256, 16
        $region32: #{tpu_custom_call.1} parent=23 // pred_fallthru
          _
      $region24: #{tpu_custom_call.1} parent=5 // pred_fallthru
        _
      %p586 = scmp.le.s32.totalorder 2, %s13
      // Predicated region
      $region33: #{tpu_custom_call.1} parent=5 // pred_check
        %p587 = pneg %p586
      $region34: #{tpu_custom_call.1} parent=5 // pred_check_branch
        %589 = sbr.rel (%p587) target = $region36
      $region35: #{tpu_custom_call.1} parent=5 // pred_region
        %s590 = ssub.s32 %s13, 2
        // Predicated region
        $region37: #{tpu_custom_call.1} parent=35 // pred_check
          %p591 = pneg %p95
        $region38: #{tpu_custom_call.1} parent=35 // pred_check_branch
          %593 = sbr.rel (%p591) target = $region40
        $region39: #{tpu_custom_call.1} parent=35 // pred_region
          %s594 = sand.u32 %s80, 1
          %s595 = scalar_lea.sflag [#allocation4], %s594
          %s596 = sand.u32 %s80, 1
          %s597 = smul.addr %s596, 64
          %s598 = scalar_lea.vmem [#allocation5], %s597
          %599 = dma.done %s595, 1024
        $region40: #{tpu_custom_call.1} parent=35 // pred_fallthru
          _
      $region36: #{tpu_custom_call.1} parent=5 // pred_fallthru
        _
    $region6: #{tpu_custom_call.1} parent=1 // loop_footer
      %s17 = sadd.s32 1, %s13
    $region7: #{tpu_custom_call.1} parent=1 // loop_footer_branch
      %12 = sbr.rel target = $region3
    $region8: #{tpu_custom_call.1} parent=1 // loop_exit
      _
    %600 = vsyncpa [#allocation3], 1
    %s601 = scalar_lea.sflag [#allocation3], 1
    %602 = vsyncpa %s601, 1
    %603 = vsyncpa [#allocation4], 1
    %s604 = scalar_lea.sflag [#allocation4], 1
    %605 = vsyncpa %s604, 1

</llo_original>
